<compile_context>
chip_gen: v7x
topology: tpu7x:2x2x1
jax: 0.10.0
libtpu: 0.0.40
codegen_flags: <defaults>
</compile_context>

<pallas_src>
import functools

import numpy as np
import jax
import jax.numpy as jnp
from jax.experimental import pallas as pl
from jax.experimental.pallas import tpu as pltpu


def _identity_kernel(x_ref, o_ref):
    # Pure pass-through: CouplingBlock.forward performs no computation.
    # Kept as a single full-tile copy (2 vld-able / 1 vst-able vregs at the
    # harness size) — no extra VALU work fused in (v5e vst-slot ceiling).
    o_ref[...] = x_ref[...]


def _lane_dense_2d(n_elems: int) -> tuple[int, int, int]:
    """Pick a lane-dense, sublane-full (rows, last) view for `n_elems`.

    Returns (rows, last, padded_elems).  `last` is always a multiple of 128
    (lane-dense -> unmasked full-lane vld/vst).  Preference order:
      1. smallest last >= 128 with n_elems % last == 0 and rows % 8 == 0
         (sublane-full: whole (8,128) vreg tiles, no padded sublanes),
      2. smallest last >= 128 with n_elems % last == 0,
      3. pad n_elems up to the next multiple of 128 and use last = 128
         (padding is trimmed wrapper-side; avoids vst.msk partial stores).
    """
    candidates = (128, 256, 512, 1024)
    for last in candidates:  # sublane-full first
        if n_elems % last == 0 and (n_elems // last) % 8 == 0:
            return n_elems // last, last, n_elems
    for last in candidates:  # lane-dense at least
        if n_elems % last == 0:
            return n_elems // last, last, n_elems
    padded = ((n_elems + 127) // 128) * 128  # pad, never lane-sparse
    return padded // 128, 128, padded


def _identity_pallas_2d(x2: jax.Array) -> jax.Array:
    """Single-block, VMEM-resident identity on a lane-dense 2-D slab.

    input_output_aliases={0: 0} lets XLA reuse the (donated) input buffer for
    the output.  Note (per review): this does NOT elide the HBM->VMEM->HBM
    round-trip inside the kernel; at 8 KiB the call is launch-latency bound,
    so no grid / pipelining knob is worth tuning here.
    """
    return pl.pallas_call(
        _identity_kernel,
        out_shape=jax.ShapeDtypeStruct(x2.shape, x2.dtype),
        in_specs=[pl.BlockSpec(memory_space=pltpu.VMEM)],
        out_specs=pl.BlockSpec(memory_space=pltpu.VMEM),
        input_output_aliases={0: 0},
    )(x2)


@functools.partial(jax.jit, donate_argnums=(0,))
def _run_identity(x: jax.Array) -> jax.Array:
    """Harness-only wrapper: lane-dense reshape -> Pallas identity -> reshape back.

    (2,4,16,16) f32 -> 2048 elems -> (16, 128) slab: 16 rows x 128 lanes =
    exactly 2 full (8,128) vregs.  Odd sizes are zero-padded to a multiple of
    128 and trimmed afterwards so the kernel never sees a lane-sparse store.
    """
    n = x.size
    rows, last, padded = _lane_dense_2d(n)
    flat = x.reshape(-1)
    if padded != n:
        flat = jnp.pad(flat, (0, padded - n))
    y2 = _identity_pallas_2d(flat.reshape(rows, last))
    y_flat = y2.reshape(-1)
    if padded != n:
        y_flat = y_flat[:n]
    return y_flat.reshape(x.shape)


class CouplingBlock:
    """JAX/Pallas port of the (empty) PyTorch CouplingBlock."""

    def __init__(self):
        # Reference __init__ defines no parameters.
        pass

    def forward(self):
        # Exact reference semantics: no inputs, no compute, returns None.
        # Per the perf review: zero device work per call is optimal on every
        # TPU generation — do NOT route this through any pallas_call.
        return None

    __call__ = forward


if __name__ == "__main__":
    key = jax.random.PRNGKey(0)
    # Small NCHW-shaped dummy consistent with a flow-model coupling block's
    # usual operand shape.  It is NOT consumed by the module's forward()
    # (which returns None); it only exercises the Pallas path once below.
    x = jax.random.normal(key, (2, 4, 16, 16), dtype=jnp.float32)
    x_host = np.asarray(x)  # host copy for the sanity check (x is donated)

    # Harness-only: run the Pallas identity kernel once and block on it.
    y = _run_identity(x)
    jax.block_until_ready(y)
    assert y.shape == tuple(x_host.shape) and y.dtype == jnp.float32
    assert np.array_equal(np.asarray(y), x_host)

    # The actual module forward: no inputs, returns None (exact semantics),
    # no device work, no sync in the per-call path.
    block = CouplingBlock()
    out = block()
    assert out is None

    print("KERNEL_OK")
</pallas_src>

<mosaic_0001>
module attributes {stable_mosaic.version = 11 : i64} {
  func.func @_identity_kernel(%arg0: memref<16x128xf32, #tpu.memory_space<vmem>>, %arg1: memref<16x128xf32, #tpu.memory_space<vmem>>) attributes {dimension_semantics = [], scalar_prefetch = 0 : i64, scratch_operands = 0 : i64, tpu.core_type = #tpu.core_type<tc>} {
    %c0 = arith.constant 0 : index
    %c0_0 = arith.constant 0 : index
    %0 = vector.load %arg0[%c0, %c0_0] : memref<16x128xf32, #tpu.memory_space<vmem>>, vector<16x128xf32>
    %c0_1 = arith.constant 0 : index
    %c0_2 = arith.constant 0 : index
    %1 = vector.load %arg1[%c0_1, %c0_2] : memref<16x128xf32, #tpu.memory_space<vmem>>, vector<16x128xf32>
    tpu.vector_store %arg1[%c0_1, %c0_2], %0 {strides = array<i32>} : memref<16x128xf32, #tpu.memory_space<vmem>>, vector<16x128xf32>,
    return
  }
}

</mosaic_0001>

<llo_original>
// kernel: _run_identity.1
$region0: #{_run_identity.1}
  #allocation0 [shape = 'u32[]', space=smem, size = 0x4, offset = 0x4, fixed_abs, tag = 'smem constant byte address 0x4 - core index']
  #allocation1 [shape = 'u32[144,128]{1,0:T(1,128)}', space=vmem, size = 0x12000, scoped, tag = 'internal scratch']
  %s0 = inlined_call_operand.vmem [shape: f32[16,128], index: 0, kind: input, shape index: {}, may-alias: {0,1}]
  %s1 = inlined_call_operand.vmem [shape: f32[16,128], index: 1, kind: output, shape index: {}, may-alias: {0,1}]
  %s2 = sld [smem:[#allocation0]]
  $region14: #{_run_identity.1} parent=0
    _
  %s4 = ssub.s32 1, %s2
  %s5 = scalar_select 0, %s4, %s2
  // Predicated region
  $region2: #{_run_identity.1} parent=0 // pred_check
    _
  $region3: #{_run_identity.1} parent=0 // pred_check_branch
    %7 = sbr.rel (0) target = $region5
  $region4: #{_run_identity.1} parent=0 // pred_region
    _
  $region5: #{_run_identity.1} parent=0 // pred_fallthru
    _
  %v8 = vld [vmem:[%s0] sm:$0xff]
  %v9 = vld [vmem:[%s0 + $0x8] sm:$0xff]
  %10 = vst [vmem:[%s1] sm:$0xff] %v8
  %11 = vst [vmem:[%s1 + $0x8] sm:$0xff] %v9
  // Predicated region
  $region6: #{_run_identity.1} parent=0 // pred_check
    _
  $region7: #{_run_identity.1} parent=0 // pred_check_branch
    %13 = sbr.rel (0) target = $region9
  $region8: #{_run_identity.1} parent=0 // pred_region
    _
  $region9: #{_run_identity.1} parent=0 // pred_fallthru
    _
  // Predicated region
  $region10: #{_run_identity.1} parent=0 // pred_check
    _
  $region11: #{_run_identity.1} parent=0 // pred_check_branch
    %15 = sbr.rel (0) target = $region13
  $region12: #{_run_identity.1} parent=0 // pred_region
    _
  $region13: #{_run_identity.1} parent=0 // pred_fallthru
    _

</llo_original>
